<compile_context>
chip_gen: v6e
topology: v6e:2x2x1
jax: 0.10.0
libtpu: 0.0.40
codegen_flags: <defaults>
</compile_context>

<pallas_src>
import functools
import math

import jax
import jax.numpy as jnp
from jax import lax
from jax.experimental import pallas as pl
from jax.experimental.pallas import tpu as pltpu


def _patch_merging_kernel(xe_ref, xo_ref, we_ref, wo_ref, b_ref, o_ref, *, eps):
    """Fused 2x2-merge + LayerNorm + (4C -> 2C) reduction for one token tile.

    xe_ref : (th, W/2, 2C)    even input rows  -> channels [x0 | x2]
    xo_ref : (th, W/2, 2C)    odd  input rows  -> channels [x1 | x3]
    we_ref : (2C, 2Cout)      gamma-folded weight rows for [x0 | x2] (resident)
    wo_ref : (2C, 2Cout)      gamma-folded weight rows for [x1 | x3] (resident)
    b_ref  : (1, 2Cout)       beta @ W (resident, f32)
    o_ref  : (th*W/2, 2Cout)
    """
    rows, wp2, two_c = xe_ref.shape
    tokens = rows * wp2
    inv_c4 = 1.0 / (2 * two_c)  # 1 / (4*C)

    # Cast to f32 first (8-sublane tiling), then collapse (rows, W/2) -> tokens.
    # The collapse is layout-free when W/2 is a multiple of 8 (true here);
    # otherwise Mosaic inserts a VMEM relayout.
    xa = xe_ref[...].astype(jnp.float32).reshape(tokens, two_c)   # [x0 | x2]
    xb = xo_ref[...].astype(jnp.float32).reshape(tokens, two_c)   # [x1 | x3]

    # LayerNorm statistics over the virtual 4C channels (= xa ++ xb), two-pass
    # (same op count as one-pass here since (x - mean) is needed anyway).
    mean = (jnp.sum(xa, axis=-1, keepdims=True)
            + jnp.sum(xb, axis=-1, keepdims=True)) * inv_c4
    ca = xa - mean
    cb = xb - mean
    var = (jnp.sum(ca * ca, axis=-1, keepdims=True)
           + jnp.sum(cb * cb, axis=-1, keepdims=True)) * inv_c4
    inv = lax.rsqrt(var + eps)

    # gamma already folded into we/wo, beta into b:  y = ((x-mean)*inv)@W' + b'
    xan = (ca * inv).astype(we_ref.dtype)
    xbn = (cb * inv).astype(wo_ref.dtype)
    y = jnp.dot(xan, we_ref[...], preferred_element_type=jnp.float32)
    y = y + jnp.dot(xbn, wo_ref[...], preferred_element_type=jnp.float32)
    y = y + b_ref[...]
    o_ref[...] = y.astype(o_ref.dtype)


def _rows_per_tile(n_rows, w2, tokens_per_tile):
    """How many (batch, h/2) image rows each grid step processes."""
    th = max(1, tokens_per_tile // w2)
    if th >= n_rows:
        return n_rows                      # single block == full output (always legal)
    sub = 8 // math.gcd(w2, 8)             # smallest th with (th * w2) % 8 == 0
    th = max((th // sub) * sub, sub)
    return min(th, n_rows)


@functools.partial(jax.jit, static_argnames=("H", "W", "tokens_per_tile", "eps"))
def patch_merging_pallas(x, gamma, beta, w, *, H, W, tokens_per_tile=256, eps=1e-5):
    """PatchMerging forward.

    x           : (B, H*W, C)
    gamma, beta : (4C,)    LayerNorm affine params
    w           : (4C, 2C) reduction weight, (in, out) layout (transposed vs
                  torch nn.Linear); pass bf16 weights for the MXU fast path.
    returns     : (B, ceil(H/2)*ceil(W/2), 2C)
    """
    B, L, C = x.shape
    assert L == H * W, "input feature has wrong size"
    c4 = 4 * C
    assert gamma.shape == (c4,) and beta.shape == (c4,)
    assert w.shape[0] == c4
    c2 = w.shape[1]
    two_c = 2 * C

    # Spatial pre-padding (only copies when H or W is odd, like the torch code).
    xr = x.reshape(B, H, W, C)
    if (H % 2) or (W % 2):
        xr = jnp.pad(xr, ((0, 0), (0, H % 2), (0, W % 2), (0, 0)))
    Hp, Wp = H + H % 2, W + W % 2
    h2, w2 = Hp // 2, Wp // 2

    # Free (bitcast) view: (B*H/2, row-parity, W/2, 2C).  For parity r, element
    # [..., q, :] = channels of x[2h+r, 2q] followed by x[2h+r, 2q+1], so the
    # 2x2 gather happens inside the kernel's input DMA (no HBM concat).
    xv = xr.reshape(B * h2, 2, w2, two_c)

    # Fold gamma into W and beta into a bias (in f32, before any bf16 cast) and
    # permute W's rows into the kernel channel order:
    #   even rows -> [x0 | x2],  odd rows -> [x1 | x3]   (torch order: x0,x1,x2,x3)
    wf = gamma.astype(jnp.float32)[:, None] * w.astype(jnp.float32)
    bias = (beta.astype(jnp.float32) @ w.astype(jnp.float32)).reshape(1, c2)
    w_even = jnp.concatenate([wf[0:C], wf[2 * C:3 * C]], axis=0).astype(w.dtype)
    w_odd = jnp.concatenate([wf[C:2 * C], wf[3 * C:4 * C]], axis=0).astype(w.dtype)

    n_rows = B * h2
    th = _rows_per_tile(n_rows, w2, tokens_per_tile)
    tokens = th * w2
    grid_m = pl.cdiv(n_rows, th)

    # VMEM budget: double-buffered activation tiles, single-buffered resident
    # weights, f32 LN temporaries + accumulators, +50% headroom.
    xbytes, wbytes, obytes = x.dtype.itemsize, w.dtype.itemsize, x.dtype.itemsize
    vmem_need = (2 * 2 * tokens * two_c * xbytes        # xe/xo tiles, x2 buffers
                 + 2 * tokens * c2 * obytes             # output tile, x2 buffers
                 + 2 * two_c * c2 * wbytes + 4 * c2     # resident weights + bias
                 + 4 * tokens * two_c * 4               # f32 LN temporaries
                 + 2 * tokens * c2 * 4)                 # f32 accumulators
    vmem_limit = min(max(int(vmem_need * 1.5), 32 << 20), 96 << 20)

    m_tokens = n_rows * w2
    cost = pl.CostEstimate(
        flops=2 * m_tokens * c4 * c2 + 10 * m_tokens * c4,
        transcendentals=m_tokens,
        bytes_accessed=(m_tokens * c4 * xbytes + m_tokens * c2 * obytes
                        + 2 * two_c * c2 * wbytes))

    kernel = functools.partial(_patch_merging_kernel, eps=eps)
    resident = dict(pipeline_mode=pl.Buffered(1))  # constant index_map -> 1 buffer

    out2d = pl.pallas_call(
        kernel,
        out_shape=jax.ShapeDtypeStruct((n_rows * w2, c2), x.dtype),
        grid_spec=pltpu.PrefetchScalarGridSpec(
            num_scalar_prefetch=0,
            grid=(grid_m,),
            in_specs=[
                pl.BlockSpec((th, None, w2, two_c), lambda i: (i, 0, 0, 0)),  # even rows
                pl.BlockSpec((th, None, w2, two_c), lambda i: (i, 1, 0, 0)),  # odd rows
                pl.BlockSpec((two_c, c2), lambda i: (0, 0), **resident),      # W_even
                pl.BlockSpec((two_c, c2), lambda i: (0, 0), **resident),      # W_odd
                pl.BlockSpec((1, c2), lambda i: (0, 0), **resident),          # bias
            ],
            out_specs=pl.BlockSpec((tokens, c2), lambda i: (i, 0)),
        ),
        compiler_params=pltpu.CompilerParams(
            dimension_semantics=("parallel",),
            vmem_limit_bytes=vmem_limit),
        cost_estimate=cost,
    )(xv, xv, w_even, w_odd, bias)

    return out2d.reshape(B, h2 * w2, c2)


def patch_merging_reference(x, gamma, beta, w, H, W, eps=1e-5):
    """Pure-JAX reference matching the PyTorch PatchMerging forward."""
    B, L, C = x.shape
    xr = x.reshape(B, H, W, C)
    if (H % 2 == 1) or (W % 2 == 1):
        xr = jnp.pad(xr, ((0, 0), (0, H % 2), (0, W % 2), (0, 0)))
    x0 = xr[:, 0::2, 0::2, :]
    x1 = xr[:, 1::2, 0::2, :]
    x2 = xr[:, 0::2, 1::2, :]
    x3 = xr[:, 1::2, 1::2, :]
    xm = jnp.concatenate([x0, x1, x2, x3], axis=-1).reshape(B, -1, 4 * C)
    xf = xm.astype(jnp.float32)
    mean = xf.mean(-1, keepdims=True)
    var = ((xf - mean) ** 2).mean(-1, keepdims=True)
    xn = (xf - mean) * lax.rsqrt(var + eps) * gamma.astype(jnp.float32) \
         + beta.astype(jnp.float32)
    y = jnp.dot(xn, w.astype(jnp.float32))
    return y.astype(x.dtype)


if __name__ == "__main__":
    # Small config consistent with PatchMerging(dim=64): x is (B, H*W, C).
    B, H, W = 2, 16, 16
    DIM = 64
    C4, C2 = 4 * DIM, 2 * DIM  # 256, 128 (lane-dense 2C output)

    key = jax.random.PRNGKey(0)
    kx, kg, kb, kw = jax.random.split(key, 4)

    x = jax.random.normal(kx, (B, H * W, DIM), dtype=jnp.float32)
    gamma = 1.0 + 0.1 * jax.random.normal(kg, (C4,), dtype=jnp.float32)
    beta = 0.1 * jax.random.normal(kb, (C4,), dtype=jnp.float32)
    # Reduction weight in (in, out) layout (transposed vs torch nn.Linear).
    w = 0.02 * jax.random.normal(kw, (C4, C2), dtype=jnp.float32)

    y_ref = patch_merging_reference(x, gamma, beta, w, H, W)

    # f32 weights path.
    y = patch_merging_pallas(x, gamma, beta, w, H=H, W=W)
    jax.block_until_ready(y)
    assert y.shape == (B, (H // 2) * (W // 2), C2), y.shape
    assert jnp.allclose(y, y_ref, atol=5e-3, rtol=5e-3), "f32 path mismatch"

    # bf16-weight MXU fast path (gamma/beta folded in f32 before the cast).
    y_bf16 = patch_merging_pallas(x, gamma, beta, w.astype(jnp.bfloat16), H=H, W=W)
    jax.block_until_ready(y_bf16)
    assert jnp.allclose(y_bf16.astype(jnp.float32), y_ref, atol=5e-2, rtol=5e-2), \
        "bf16 path mismatch"

    print("KERNEL_OK")
</pallas_src>

<mosaic_0001>
module attributes {stable_mosaic.version = 11 : i64} {
  func.func @_patch_merging_kernel(%arg0: i32, %arg1: memref<16x1x8x128xf32, #tpu.memory_space<vmem>>, %arg2: memref<16x1x8x128xf32, #tpu.memory_space<vmem>>, %arg3: memref<128x128xf32, #tpu.memory_space<vmem>>, %arg4: memref<128x128xf32, #tpu.memory_space<vmem>>, %arg5: memref<1x128xf32, #tpu.memory_space<vmem>>, %arg6: memref<128x128xf32, #tpu.memory_space<vmem>>) attributes {dimension_semantics = [#tpu.dimension_semantics<parallel>], iteration_bounds = array<i64: 1>, scalar_prefetch = 0 : i64, scratch_operands = 0 : i64, tpu.core_type = #tpu.core_type<tc>, window_params = [{transform_indices = @transform_0, window_bounds = array<i64: 16, 1, 8, 128>}, {transform_indices = @transform_1, window_bounds = array<i64: 16, 1, 8, 128>}, {pipeline_mode = #tpu.pipeline_mode<synchronous>, transform_indices = @transform_2, window_bounds = array<i64: 128, 128>}, {pipeline_mode = #tpu.pipeline_mode<synchronous>, transform_indices = @transform_3, window_bounds = array<i64: 128, 128>}, {pipeline_mode = #tpu.pipeline_mode<synchronous>, transform_indices = @transform_4, window_bounds = array<i64: 1, 128>}, {transform_indices = @transform_5, window_bounds = array<i64: 128, 128>}]} {
    %c0 = arith.constant 0 : index
    %c0_0 = arith.constant 0 : index
    %c0_1 = arith.constant 0 : index
    %c0_2 = arith.constant 0 : index
    %0 = vector.load %arg1[%c0, %c0_0, %c0_1, %c0_2] : memref<16x1x8x128xf32, #tpu.memory_space<vmem>>, vector<16x1x8x128xf32>
    %1 = vector.shape_cast %0 : vector<16x1x8x128xf32> to vector<16x8x128xf32>
    %2 = vector.shape_cast %1 : vector<16x8x128xf32> to vector<128x128xf32>
    %c0_3 = arith.constant 0 : index
    %c0_4 = arith.constant 0 : index
    %c0_5 = arith.constant 0 : index
    %c0_6 = arith.constant 0 : index
    %3 = vector.load %arg2[%c0_3, %c0_4, %c0_5, %c0_6] : memref<16x1x8x128xf32, #tpu.memory_space<vmem>>, vector<16x1x8x128xf32>
    %4 = vector.shape_cast %3 : vector<16x1x8x128xf32> to vector<16x8x128xf32>
    %5 = vector.shape_cast %4 : vector<16x8x128xf32> to vector<128x128xf32>
    %cst = arith.constant dense<0.000000e+00> : vector<128xf32>
    %6 = vector.multi_reduction <add>, %2, %cst [1] : vector<128x128xf32> to vector<128xf32>
    %7 = vector.shape_cast %6 : vector<128xf32> to vector<128x1xf32>
    %cst_7 = arith.constant dense<0.000000e+00> : vector<128xf32>
    %8 = vector.multi_reduction <add>, %5, %cst_7 [1] : vector<128x128xf32> to vector<128xf32>
    %9 = vector.shape_cast %8 : vector<128xf32> to vector<128x1xf32>
    %10 = arith.addf %7, %9 : vector<128x1xf32>
    %cst_8 = arith.constant 3.906250e-03 : f32
    %11 = vector.broadcast %cst_8 : f32 to vector<128x1xf32>
    %12 = arith.mulf %10, %11 : vector<128x1xf32>
    %13 = vector.broadcast %12 : vector<128x1xf32> to vector<128x128xf32>
    %14 = arith.subf %2, %13 : vector<128x128xf32>
    %15 = vector.broadcast %12 : vector<128x1xf32> to vector<128x128xf32>
    %16 = arith.subf %5, %15 : vector<128x128xf32>
    %17 = arith.mulf %14, %14 : vector<128x128xf32>
    %cst_9 = arith.constant dense<0.000000e+00> : vector<128xf32>
    %18 = vector.multi_reduction <add>, %17, %cst_9 [1] : vector<128x128xf32> to vector<128xf32>
    %19 = vector.shape_cast %18 : vector<128xf32> to vector<128x1xf32>
    %20 = arith.mulf %16, %16 : vector<128x128xf32>
    %cst_10 = arith.constant dense<0.000000e+00> : vector<128xf32>
    %21 = vector.multi_reduction <add>, %20, %cst_10 [1] : vector<128x128xf32> to vector<128xf32>
    %22 = vector.shape_cast %21 : vector<128xf32> to vector<128x1xf32>
    %23 = arith.addf %19, %22 : vector<128x1xf32>
    %cst_11 = arith.constant 3.906250e-03 : f32
    %24 = vector.broadcast %cst_11 : f32 to vector<128x1xf32>
    %25 = arith.mulf %23, %24 : vector<128x1xf32>
    %cst_12 = arith.constant 9.99999974E-6 : f32
    %26 = vector.broadcast %cst_12 : f32 to vector<128x1xf32>
    %27 = arith.addf %25, %26 : vector<128x1xf32>
    %28 = math.rsqrt %27 : vector<128x1xf32>
    %29 = vector.broadcast %28 : vector<128x1xf32> to vector<128x128xf32>
    %30 = arith.mulf %14, %29 : vector<128x128xf32>
    %31 = vector.broadcast %28 : vector<128x1xf32> to vector<128x128xf32>
    %32 = arith.mulf %16, %31 : vector<128x128xf32>
    %c0_13 = arith.constant 0 : index
    %c0_14 = arith.constant 0 : index
    %33 = vector.load %arg3[%c0_13, %c0_14] : memref<128x128xf32, #tpu.memory_space<vmem>>, vector<128x128xf32>
    %cst_15 = arith.constant dense<0.000000e+00> : vector<128x128xf32>
    %34 = tpu.matmul %30, %33, %cst_15 {dimension_numbers = #tpu.dot_dimension_numbers<[1], [0], [0], [1], [0, 0, 1, 1], [], []>} : vector<128x128xf32>, vector<128x128xf32>, vector<128x128xf32> -> vector<128x128xf32>
    %c0_16 = arith.constant 0 : index
    %c0_17 = arith.constant 0 : index
    %35 = vector.load %arg4[%c0_16, %c0_17] : memref<128x128xf32, #tpu.memory_space<vmem>>, vector<128x128xf32>
    %cst_18 = arith.constant dense<0.000000e+00> : vector<128x128xf32>
    %36 = tpu.matmul %32, %35, %cst_18 {dimension_numbers = #tpu.dot_dimension_numbers<[1], [0], [0], [1], [0, 0, 1, 1], [], []>} : vector<128x128xf32>, vector<128x128xf32>, vector<128x128xf32> -> vector<128x128xf32>
    %37 = arith.addf %34, %36 : vector<128x128xf32>
    %c0_19 = arith.constant 0 : index
    %c0_20 = arith.constant 0 : index
    %38 = vector.load %arg5[%c0_19, %c0_20] : memref<1x128xf32, #tpu.memory_space<vmem>>, vector<1x128xf32>
    %39 = vector.broadcast %38 : vector<1x128xf32> to vector<128x128xf32>
    %40 = arith.addf %37, %39 : vector<128x128xf32>
    %c0_21 = arith.constant 0 : index
    %c0_22 = arith.constant 0 : index
    %41 = vector.load %arg6[%c0_21, %c0_22] : memref<128x128xf32, #tpu.memory_space<vmem>>, vector<128x128xf32>
    tpu.vector_store %arg6[%c0_21, %c0_22], %40 {strides = array<i32>} : memref<128x128xf32, #tpu.memory_space<vmem>>, vector<128x128xf32>,
    return
  }
  func.func @transform_0(%arg0: i32) -> (i32, i32, i32, i32) {
    %c0_i32 = arith.constant 0 : i32
    %c0_i32_0 = arith.constant 0 : i32
    %c0_i32_1 = arith.constant 0 : i32
    %c0_i32_2 = arith.constant 0 : i32
    return %arg0, %c0_i32, %c0_i32_0, %c0_i32_1 : i32, i32, i32, i32
  }
  func.func @transform_1(%arg0: i32) -> (i32, i32, i32, i32) {
    %c1_i32 = arith.constant 1 : i32
    %c0_i32 = arith.constant 0 : i32
    %c0_i32_0 = arith.constant 0 : i32
    %c0_i32_1 = arith.constant 0 : i32
    return %arg0, %c1_i32, %c0_i32, %c0_i32_0 : i32, i32, i32, i32
  }
  func.func @transform_2(%arg0: i32) -> (i32, i32) {
    %c0_i32 = arith.constant 0 : i32
    %c0_i32_0 = arith.constant 0 : i32
    %c0_i32_1 = arith.constant 0 : i32
    return %c0_i32, %c0_i32_0 : i32, i32
  }
  func.func @transform_3(%arg0: i32) -> (i32, i32) {
    %c0_i32 = arith.constant 0 : i32
    %c0_i32_0 = arith.constant 0 : i32
    %c0_i32_1 = arith.constant 0 : i32
    return %c0_i32, %c0_i32_0 : i32, i32
  }
  func.func @transform_4(%arg0: i32) -> (i32, i32) {
    %c0_i32 = arith.constant 0 : i32
    %c0_i32_0 = arith.constant 0 : i32
    %c0_i32_1 = arith.constant 0 : i32
    return %c0_i32, %c0_i32_0 : i32, i32
  }
  func.func @transform_5(%arg0: i32) -> (i32, i32) {
    %c0_i32 = arith.constant 0 : i32
    %c0_i32_0 = arith.constant 0 : i32
    return %arg0, %c0_i32 : i32, i32
  }
}

</mosaic_0001>

<llo_original>
// kernel: patch_merging_pallas.1
$region0: #{patch_merging_pallas.1}
  #allocation0 [shape = 'u32[]', space=smem, size = 0x4, offset = 0x4, fixed_abs, tag = 'smem constant byte address 0x4 - core index']
  #allocation1 [shape = 'u32[144,128]{1,0:T(1,128)}', space=vmem, size = 0x12000, scoped, tag = 'internal scratch']
  %s0 = inlined_call_operand.vmem [shape: f32[16,2,8,128], index: 0, kind: input, shape index: {}, may-alias: {0,1}]
  %s1 = inlined_call_operand.vmem [shape: f32[16,2,8,128], index: 1, kind: input, shape index: {}, may-alias: {0,1}]
  %s2 = inlined_call_operand.vmem [shape: f32[128,128], index: 2, kind: input, shape index: {}]
  %s3 = inlined_call_operand.vmem [shape: f32[128,128], index: 3, kind: input, shape index: {}]
  %s4 = inlined_call_operand.vmem [shape: f32[1,128], index: 4, kind: input, shape index: {}]
  %s5 = inlined_call_operand.hbm [shape: f32[128,128], index: 5, kind: output, shape index: {}]
  %s6 = sld [smem:[#allocation0]]
  $region106: #{patch_merging_pallas.1} parent=0
    _
  %s8 = ssub.s32 1, %s6
  %s9 = scalar_select 0, %s8, %s6
  $region1: #{patch_merging_pallas.1} parent=0
    #allocation2 [shape = 'u8[65536]{0}', space=vmem, size = 0x10000, scoped, tag = 'input window, operand 0, single buffered']
    #allocation3 [shape = 'u8[65536]{0}', space=vmem, size = 0x10000, scoped, tag = 'input window, operand 1, single buffered']
    #allocation4 [shape = 'u8[65536]{0}', space=vmem, size = 0x10000, scoped, tag = 'output window, operand 0, single buffered']
    #allocation5 [shape = 's32[1]{0}', space=sflag, size = 0x4, scoped, tag = 'scoped memory for patch_merging_pallas.1']
    %10 = vsyncpa [#allocation5], 0
    // Predicated region
    $region2: #{patch_merging_pallas.1} parent=1 // pred_check
      _
    $region3: #{patch_merging_pallas.1} parent=1 // pred_check_branch
      %12 = sbr.rel (0) target = $region5
    $region4: #{patch_merging_pallas.1} parent=1 // pred_region
      // Predicated region
      $region6: #{patch_merging_pallas.1} parent=4 // pred_check
        _
      $region7: #{patch_merging_pallas.1} parent=4 // pred_check_branch
        %14 = sbr.rel (0) target = $region9
      $region8: #{patch_merging_pallas.1} parent=4 // pred_region
        // Predicated region
        $region10: #{patch_merging_pallas.1} parent=8 // pred_check
          _
        $region11: #{patch_merging_pallas.1} parent=8 // pred_check_branch
          %16 = sbr.rel (0) target = $region13
        $region12: #{patch_merging_pallas.1} parent=8 // pred_region
          // Predicated region
          $region25: #{patch_merging_pallas.1} parent=12 // pred_check
            _
          $region26: #{patch_merging_pallas.1} parent=12 // pred_check_branch
            %62 = sbr.rel (0) target = $region28
          $region27: #{patch_merging_pallas.1} parent=12 // pred_region
            loop: start=0, step=1, limit=1
            $region29: #{patch_merging_pallas.1} parent=27 // loop_pre_header
              _
            $region30: #{patch_merging_pallas.1} parent=27 // loop_header
              %s64 = sphi 0, %s68
              %p65 = scmp.ge.s32.totalorder %s64, 1
              %s69 = sphi %s0, %s0
              %s70 = sphi [#allocation2], [#allocation2]
            $region31: #{patch_merging_pallas.1} parent=27 // loop_header_branch
              %67 = sbr.rel (%p65) target = $region35
            $region32: #{patch_merging_pallas.1} parent=27 // loop_body
              %v71 = vld [vmem:[%s69] sm:$0xff]
              %72 = vst [vmem:[%s70] sm:$0xff] %v71
              %v73 = vld [vmem:[%s69 + $0x10] sm:$0xff]
              %74 = vst [vmem:[%s70 + $0x8] sm:$0xff] %v73
              %v75 = vld [vmem:[%s69 + $0x20] sm:$0xff]
              %76 = vst [vmem:[%s70 + $0x10] sm:$0xff] %v75
              %v77 = vld [vmem:[%s69 + $0x30] sm:$0xff]
              %78 = vst [vmem:[%s70 + $0x18] sm:$0xff] %v77
              %v79 = vld [vmem:[%s69 + $0x40] sm:$0xff]
              %80 = vst [vmem:[%s70 + $0x20] sm:$0xff] %v79
              %v81 = vld [vmem:[%s69 + $0x50] sm:$0xff]
              %82 = vst [vmem:[%s70 + $0x28] sm:$0xff] %v81
              %v83 = vld [vmem:[%s69 + $0x60] sm:$0xff]
              %84 = vst [vmem:[%s70 + $0x30] sm:$0xff] %v83
              %v85 = vld [vmem:[%s69 + $0x70] sm:$0xff]
              %86 = vst [vmem:[%s70 + $0x38] sm:$0xff] %v85
              %v87 = vld [vmem:[%s69 + $0x80] sm:$0xff]
              %88 = vst [vmem:[%s70 + $0x40] sm:$0xff] %v87
              %v89 = vld [vmem:[%s69 + $0x90] sm:$0xff]
              %90 = vst [vmem:[%s70 + $0x48] sm:$0xff] %v89
              %v91 = vld [vmem:[%s69 + $0xa0] sm:$0xff]
              %92 = vst [vmem:[%s70 + $0x50] sm:$0xff] %v91
              %v93 = vld [vmem:[%s69 + $0xb0] sm:$0xff]
              %94 = vst [vmem:[%s70 + $0x58] sm:$0xff] %v93
              %v95 = vld [vmem:[%s69 + $0xc0] sm:$0xff]
              %96 = vst [vmem:[%s70 + $0x60] sm:$0xff] %v95
              %v97 = vld [vmem:[%s69 + $0xd0] sm:$0xff]
              %98 = vst [vmem:[%s70 + $0x68] sm:$0xff] %v97
              %v99 = vld [vmem:[%s69 + $0xe0] sm:$0xff]
              %100 = vst [vmem:[%s70 + $0x70] sm:$0xff] %v99
              %v101 = vld [vmem:[%s69 + $0xf0] sm:$0xff]
              %102 = vst [vmem:[%s70 + $0x78] sm:$0xff] %v101
            $region33: #{patch_merging_pallas.1} parent=27 // loop_footer
              %s68 = sadd.s32 1, %s64
            $region34: #{patch_merging_pallas.1} parent=27 // loop_footer_branch
              %63 = sbr.rel target = $region30
            $region35: #{patch_merging_pallas.1} parent=27 // loop_exit
              _
          $region28: #{patch_merging_pallas.1} parent=12 // pred_fallthru
            _
          // Predicated region
          $region36: #{patch_merging_pallas.1} parent=12 // pred_check
            _
          $region37: #{patch_merging_pallas.1} parent=12 // pred_check_branch
            %104 = sbr.rel target = $region39
          $region38: #{patch_merging_pallas.1} parent=12 // pred_region
            _
          $region39: #{patch_merging_pallas.1} parent=12 // pred_fallthru
            _
        $region13: #{patch_merging_pallas.1} parent=8 // pred_fallthru
          _
        // Predicated region
        $region14: #{patch_merging_pallas.1} parent=8 // pred_check
          _
        $region15: #{patch_merging_pallas.1} parent=8 // pred_check_branch
          %18 = sbr.rel target = $region17
        $region16: #{patch_merging_pallas.1} parent=8 // pred_region
          %s20 = ssub.s32 256, 1
          loop: start=0, step=1, limit=1
          $region18: #{patch_merging_pallas.1} parent=16 // loop_pre_header
            _
          $region19: #{patch_merging_pallas.1} parent=16 // loop_header
            %s22 = sphi 0, %s26
            %p23 = scmp.ge.s32.totalorder %s22, 1
            %s27 = sphi %s0, %s0
            %s28 = sphi [#allocation2], [#allocation2]
          $region20: #{patch_merging_pallas.1} parent=16 // loop_header_branch
            %25 = sbr.rel (%p23) target = $region24
          $region21: #{patch_merging_pallas.1} parent=16 // loop_body
            %v29 = vld [vmem:[%s27] sm:%s20]
            %30 = vst [vmem:[%s28] sm:%s20] %v29
            %v31 = vld [vmem:[%s27 + $0x10] sm:%s20]
            %32 = vst [vmem:[%s28 + $0x8] sm:%s20] %v31
            %v33 = vld [vmem:[%s27 + $0x20] sm:%s20]
            %34 = vst [vmem:[%s28 + $0x10] sm:%s20] %v33
            %v35 = vld [vmem:[%s27 + $0x30] sm:%s20]
            %36 = vst [vmem:[%s28 + $0x18] sm:%s20] %v35
            %v37 = vld [vmem:[%s27 + $0x40] sm:%s20]
            %38 = vst [vmem:[%s28 + $0x20] sm:%s20] %v37
            %v39 = vld [vmem:[%s27 + $0x50] sm:%s20]
            %40 = vst [vmem:[%s28 + $0x28] sm:%s20] %v39
            %v41 = vld [vmem:[%s27 + $0x60] sm:%s20]
            %42 = vst [vmem:[%s28 + $0x30] sm:%s20] %v41
            %v43 = vld [vmem:[%s27 + $0x70] sm:%s20]
            %44 = vst [vmem:[%s28 + $0x38] sm:%s20] %v43
            %v45 = vld [vmem:[%s27 + $0x80] sm:%s20]
            %46 = vst [vmem:[%s28 + $0x40] sm:%s20] %v45
            %v47 = vld [vmem:[%s27 + $0x90] sm:%s20]
            %48 = vst [vmem:[%s28 + $0x48] sm:%s20] %v47
            %v49 = vld [vmem:[%s27 + $0xa0] sm:%s20]
            %50 = vst [vmem:[%s28 + $0x50] sm:%s20] %v49
            %v51 = vld [vmem:[%s27 + $0xb0] sm:%s20]
            %52 = vst [vmem:[%s28 + $0x58] sm:%s20] %v51
            %v53 = vld [vmem:[%s27 + $0xc0] sm:%s20]
            %54 = vst [vmem:[%s28 + $0x60] sm:%s20] %v53
            %v55 = vld [vmem:[%s27 + $0xd0] sm:%s20]
            %56 = vst [vmem:[%s28 + $0x68] sm:%s20] %v55
            %v57 = vld [vmem:[%s27 + $0xe0] sm:%s20]
            %58 = vst [vmem:[%s28 + $0x70] sm:%s20] %v57
            %v59 = vld [vmem:[%s27 + $0xf0] sm:%s20]
            %60 = vst [vmem:[%s28 + $0x78] sm:%s20] %v59
          $region22: #{patch_merging_pallas.1} parent=16 // loop_footer
            %s26 = sadd.s32 1, %s22
          $region23: #{patch_merging_pallas.1} parent=16 // loop_footer_branch
            %21 = sbr.rel target = $region19
          $region24: #{patch_merging_pallas.1} parent=16 // loop_exit
            _
        $region17: #{patch_merging_pallas.1} parent=8 // pred_fallthru
          _
      $region9: #{patch_merging_pallas.1} parent=4 // pred_fallthru
        _
      %105 = vnop
    $region5: #{patch_merging_pallas.1} parent=1 // pred_fallthru
      _
    // Predicated region
    $region40: #{patch_merging_pallas.1} parent=1 // pred_check
      _
    $region41: #{patch_merging_pallas.1} parent=1 // pred_check_branch
      %107 = sbr.rel (0) target = $region43
    $region42: #{patch_merging_pallas.1} parent=1 // pred_region
      %s108 = scalar_lea.vmem %s1, 8
      // Predicated region
      $region44: #{patch_merging_pallas.1} parent=42 // pred_check
        _
      $region45: #{patch_merging_pallas.1} parent=42 // pred_check_branch
        %110 = sbr.rel (0) target = $region47
      $region46: #{patch_merging_pallas.1} parent=42 // pred_region
        // Predicated region
        $region48: #{patch_merging_pallas.1} parent=46 // pred_check
          _
        $region49: #{patch_merging_pallas.1} parent=46 // pred_check_branch
          %112 = sbr.rel (0) target = $region51
        $region50: #{patch_merging_pallas.1} parent=46 // pred_region
          // Predicated region
          $region63: #{patch_merging_pallas.1} parent=50 // pred_check
            _
          $region64: #{patch_merging_pallas.1} parent=50 // pred_check_branch
            %158 = sbr.rel (0) target = $region66
          $region65: #{patch_merging_pallas.1} parent=50 // pred_region
            loop: start=0, step=1, limit=1
            $region67: #{patch_merging_pallas.1} parent=65 // loop_pre_header
              _
            $region68: #{patch_merging_pallas.1} parent=65 // loop_header
              %s160 = sphi 0, %s164
              %p161 = scmp.ge.s32.totalorder %s160, 1
              %s165 = sphi %s108, %s108
              %s166 = sphi [#allocation3], [#allocation3]
            $region69: #{patch_merging_pallas.1} parent=65 // loop_header_branch
              %163 = sbr.rel (%p161) target = $region73
            $region70: #{patch_merging_pallas.1} parent=65 // loop_body
              %v167 = vld [vmem:[%s165] sm:$0xff]
              %168 = vst [vmem:[%s166] sm:$0xff] %v167
              %v169 = vld [vmem:[%s165 + $0x10] sm:$0xff]
              %170 = vst [vmem:[%s166 + $0x8] sm:$0xff] %v169
              %v171 = vld [vmem:[%s165 + $0x20] sm:$0xff]
              %172 = vst [vmem:[%s166 + $0x10] sm:$0xff] %v171
              %v173 = vld [vmem:[%s165 + $0x30] sm:$0xff]
              %174 = vst [vmem:[%s166 + $0x18] sm:$0xff] %v173
              %v175 = vld [vmem:[%s165 + $0x40] sm:$0xff]
              %176 = vst [vmem:[%s166 + $0x20] sm:$0xff] %v175
              %v177 = vld [vmem:[%s165 + $0x50] sm:$0xff]
              %178 = vst [vmem:[%s166 + $0x28] sm:$0xff] %v177
              %v179 = vld [vmem:[%s165 + $0x60] sm:$0xff]
              %180 = vst [vmem:[%s166 + $0x30] sm:$0xff] %v179
              %v181 = vld [vmem:[%s165 + $0x70] sm:$0xff]
              %182 = vst [vmem:[%s166 + $0x38] sm:$0xff] %v181
              %v183 = vld [vmem:[%s165 + $0x80] sm:$0xff]
              %184 = vst [vmem:[%s166 + $0x40] sm:$0xff] %v183
              %v185 = vld [vmem:[%s165 + $0x90] sm:$0xff]
              %186 = vst [vmem:[%s166 + $0x48] sm:$0xff] %v185
              %v187 = vld [vmem:[%s165 + $0xa0] sm:$0xff]
              %188 = vst [vmem:[%s166 + $0x50] sm:$0xff] %v187
              %v189 = vld [vmem:[%s165 + $0xb0] sm:$0xff]
              %190 = vst [vmem:[%s166 + $0x58] sm:$0xff] %v189
              %v191 = vld [vmem:[%s165 + $0xc0] sm:$0xff]
              %192 = vst [vmem:[%s166 + $0x60] sm:$0xff] %v191
              %v193 = vld [vmem:[%s165 + $0xd0] sm:$0xff]
              %194 = vst [vmem:[%s166 + $0x68] sm:$0xff] %v193
              %v195 = vld [vmem:[%s165 + $0xe0] sm:$0xff]
              %196 = vst [vmem:[%s166 + $0x70] sm:$0xff] %v195
              %v197 = vld [vmem:[%s165 + $0xf0] sm:$0xff]
              %198 = vst [vmem:[%s166 + $0x78] sm:$0xff] %v197
            $region71: #{patch_merging_pallas.1} parent=65 // loop_footer
              %s164 = sadd.s32 1, %s160
            $region72: #{patch_merging_pallas.1} parent=65 // loop_footer_branch
              %159 = sbr.rel target = $region68
            $region73: #{patch_merging_pallas.1} parent=65 // loop_exit
              _
          $region66: #{patch_merging_pallas.1} parent=50 // pred_fallthru
            _
          // Predicated region
          $region74: #{patch_merging_pallas.1} parent=50 // pred_check
            _
          $region75: #{patch_merging_pallas.1} parent=50 // pred_check_branch
            %200 = sbr.rel target = $region77
          $region76: #{patch_merging_pallas.1} parent=50 // pred_region
            _
          $region77: #{patch_merging_pallas.1} parent=50 // pred_fallthru
            _
        $region51: #{patch_merging_pallas.1} parent=46 // pred_fallthru
          _
        // Predicated region
        $region52: #{patch_merging_pallas.1} parent=46 // pred_check
          _
        $region53: #{patch_merging_pallas.1} parent=46 // pred_check_branch
          %114 = sbr.rel target = $region55
        $region54: #{patch_merging_pallas.1} parent=46 // pred_region
          %s116 = ssub.s32 256, 1
          loop: start=0, step=1, limit=1
          $region56: #{patch_merging_pallas.1} parent=54 // loop_pre_header
            _
          $region57: #{patch_merging_pallas.1} parent=54 // loop_header
            %s118 = sphi 0, %s122
            %p119 = scmp.ge.s32.totalorder %s118, 1
            %s123 = sphi %s108, %s108
            %s124 = sphi [#allocation3], [#allocation3]
          $region58: #{patch_merging_pallas.1} parent=54 // loop_header_branch
            %121 = sbr.rel (%p119) target = $region62
          $region59: #{patch_merging_pallas.1} parent=54 // loop_body
            %v125 = vld [vmem:[%s123] sm:%s116]
            %126 = vst [vmem:[%s124] sm:%s116] %v125
            %v127 = vld [vmem:[%s123 + $0x10] sm:%s116]
            %128 = vst [vmem:[%s124 + $0x8] sm:%s116] %v127
            %v129 = vld [vmem:[%s123 + $0x20] sm:%s116]
            %130 = vst [vmem:[%s124 + $0x10] sm:%s116] %v129
            %v131 = vld [vmem:[%s123 + $0x30] sm:%s116]
            %132 = vst [vmem:[%s124 + $0x18] sm:%s116] %v131
            %v133 = vld [vmem:[%s123 + $0x40] sm:%s116]
            %134 = vst [vmem:[%s124 + $0x20] sm:%s116] %v133
            %v135 = vld [vmem:[%s123 + $0x50] sm:%s116]
            %136 = vst [vmem:[%s124 + $0x28] sm:%s116] %v135
            %v137 = vld [vmem:[%s123 + $0x60] sm:%s116]
            %138 = vst [vmem:[%s124 + $0x30] sm:%s116] %v137
            %v139 = vld [vmem:[%s123 + $0x70] sm:%s116]
            %140 = vst [vmem:[%s124 + $0x38] sm:%s116] %v139
            %v141 = vld [vmem:[%s123 + $0x80] sm:%s116]
            %142 = vst [vmem:[%s124 + $0x40] sm:%s116] %v141
            %v143 = vld [vmem:[%s123 + $0x90] sm:%s116]
            %144 = vst [vmem:[%s124 + $0x48] sm:%s116] %v143
            %v145 = vld [vmem:[%s123 + $0xa0] sm:%s116]
            %146 = vst [vmem:[%s124 + $0x50] sm:%s116] %v145
            %v147 = vld [vmem:[%s123 + $0xb0] sm:%s116]
            %148 = vst [vmem:[%s124 + $0x58] sm:%s116] %v147
            %v149 = vld [vmem:[%s123 + $0xc0] sm:%s116]
            %150 = vst [vmem:[%s124 + $0x60] sm:%s116] %v149
            %v151 = vld [vmem:[%s123 + $0xd0] sm:%s116]
            %152 = vst [vmem:[%s124 + $0x68] sm:%s116] %v151
            %v153 = vld [vmem:[%s123 + $0xe0] sm:%s116]
            %154 = vst [vmem:[%s124 + $0x70] sm:%s116] %v153
            %v155 = vld [vmem:[%s123 + $0xf0] sm:%s116]
            %156 = vst [vmem:[%s124 + $0x78] sm:%s116] %v155
          $region60: #{patch_merging_pallas.1} parent=54 // loop_footer
            %s122 = sadd.s32 1, %s118
          $region61: #{patch_merging_pallas.1} parent=54 // loop_footer_branch
            %117 = sbr.rel target = $region57
          $region62: #{patch_merging_pallas.1} parent=54 // loop_exit
            _
        $region55: #{patch_merging_pallas.1} parent=46 // pred_fallthru
          _
      $region47: #{patch_merging_pallas.1} parent=42 // pred_fallthru
        _
      %201 = vnop
    $region43: #{patch_merging_pallas.1} parent=1 // pred_fallthru
      _
    // Predicated region
    $region78: #{patch_merging_pallas.1} parent=1 // pred_check
      _
    $region79: #{patch_merging_pallas.1} parent=1 // pred_check_branch
      %203 = sbr.rel (0) target = $region81
    $region80: #{patch_merging_pallas.1} parent=1 // pred_region
      _
    $region81: #{patch_merging_pallas.1} parent=1 // pred_fallthru
      _
    // Predicated region
    $region82: #{patch_merging_pallas.1} parent=1 // pred_check
      _
    $region83: #{patch_merging_pallas.1} parent=1 // pred_check_branch
      %205 = sbr.rel (0) target = $region85
    $region84: #{patch_merging_pallas.1} parent=1 // pred_region
      _
    $region85: #{patch_merging_pallas.1} parent=1 // pred_fallthru
      _
    // Predicated region
    $region86: #{patch_merging_pallas.1} parent=1 // pred_check
      _
    $region87: #{patch_merging_pallas.1} parent=1 // pred_check_branch
      %207 = sbr.rel (0) target = $region89
    $region88: #{patch_merging_pallas.1} parent=1 // pred_region
      _
    $region89: #{patch_merging_pallas.1} parent=1 // pred_fallthru
      _
    // Predicated region
    $region90: #{patch_merging_pallas.1} parent=1 // pred_check
      _
    $region91: #{patch_merging_pallas.1} parent=1 // pred_check_branch
      %209 = sbr.rel (0) target = $region93
    $region92: #{patch_merging_pallas.1} parent=1 // pred_region
      _
    $region93: #{patch_merging_pallas.1} parent=1 // pred_fallthru
      _
    // Predicated region
    $region94: #{patch_merging_pallas.1} parent=1 // pred_check
      _
    $region95: #{patch_merging_pallas.1} parent=1 // pred_check_branch
      %211 = sbr.rel (0) target = $region97
    $region96: #{patch_merging_pallas.1} parent=1 // pred_region
      _
    $region97: #{patch_merging_pallas.1} parent=1 // pred_fallthru
      _
    %v212 = vld [vmem:[#allocation2] sm:$0xff]
    %v213 = vld [vmem:[#allocation2 + $0x8] sm:$0xff]
    %v214 = vld [vmem:[#allocation2 + $0x10] sm:$0xff]
    %v215 = vld [vmem:[#allocation2 + $0x18] sm:$0xff]
    %v216 = vld [vmem:[#allocation2 + $0x20] sm:$0xff]
    %v217 = vld [vmem:[#allocation2 + $0x28] sm:$0xff]
    %v218 = vld [vmem:[#allocation2 + $0x30] sm:$0xff]
    %v219 = vld [vmem:[#allocation2 + $0x38] sm:$0xff]
    %v220 = vld [vmem:[#allocation2 + $0x40] sm:$0xff]
    %v221 = vld [vmem:[#allocation2 + $0x48] sm:$0xff]
    %v222 = vld [vmem:[#allocation2 + $0x50] sm:$0xff]
    %v223 = vld [vmem:[#allocation2 + $0x58] sm:$0xff]
    %v224 = vld [vmem:[#allocation2 + $0x60] sm:$0xff]
    %v225 = vld [vmem:[#allocation2 + $0x68] sm:$0xff]
    %v226 = vld [vmem:[#allocation2 + $0x70] sm:$0xff]
    %v227 = vld [vmem:[#allocation2 + $0x78] sm:$0xff]
    %v228 = vld [vmem:[#allocation3] sm:$0xff]
    %v229 = vld [vmem:[#allocation3 + $0x8] sm:$0xff]
    %v230 = vld [vmem:[#allocation3 + $0x10] sm:$0xff]
    %v231 = vld [vmem:[#allocation3 + $0x18] sm:$0xff]
    %v232 = vld [vmem:[#allocation3 + $0x20] sm:$0xff]
    %v233 = vld [vmem:[#allocation3 + $0x28] sm:$0xff]
    %v234 = vld [vmem:[#allocation3 + $0x30] sm:$0xff]
    %v235 = vld [vmem:[#allocation3 + $0x38] sm:$0xff]
    %v236 = vld [vmem:[#allocation3 + $0x40] sm:$0xff]
    %v237 = vld [vmem:[#allocation3 + $0x48] sm:$0xff]
    %v238 = vld [vmem:[#allocation3 + $0x50] sm:$0xff]
    %v239 = vld [vmem:[#allocation3 + $0x58] sm:$0xff]
    %v240 = vld [vmem:[#allocation3 + $0x60] sm:$0xff]
    %v241 = vld [vmem:[#allocation3 + $0x68] sm:$0xff]
    %v242 = vld [vmem:[#allocation3 + $0x70] sm:$0xff]
    %v243 = vld [vmem:[#allocation3 + $0x78] sm:$0xff]
    %244 = vadd.xlane.f32.xlu0 %v212
    %v245 = vpop.xlane.xlu0 %244
    %246 = vadd.xlane.f32.xlu0 %v213
    %v247 = vpop.xlane.xlu0 %246
    %248 = vadd.xlane.f32.xlu0 %v214
    %v249 = vpop.xlane.xlu0 %248
    %250 = vadd.xlane.f32.xlu0 %v215
    %v251 = vpop.xlane.xlu0 %250
    %252 = vadd.xlane.f32.xlu0 %v216
    %v253 = vpop.xlane.xlu0 %252
    %254 = vadd.xlane.f32.xlu0 %v217
    %v255 = vpop.xlane.xlu0 %254
    %256 = vadd.xlane.f32.xlu0 %v218
    %v257 = vpop.xlane.xlu0 %256
    %258 = vadd.xlane.f32.xlu0 %v219
    %v259 = vpop.xlane.xlu0 %258
    %260 = vadd.xlane.f32.xlu0 %v220
    %v261 = vpop.xlane.xlu0 %260
    %262 = vadd.xlane.f32.xlu0 %v221
    %v263 = vpop.xlane.xlu0 %262
    %264 = vadd.xlane.f32.xlu0 %v222
    %v265 = vpop.xlane.xlu0 %264
    %266 = vadd.xlane.f32.xlu0 %v223
    %v267 = vpop.xlane.xlu0 %266
    %268 = vadd.xlane.f32.xlu0 %v224
    %v269 = vpop.xlane.xlu0 %268
    %270 = vadd.xlane.f32.xlu0 %v225
    %v271 = vpop.xlane.xlu0 %270
    %272 = vadd.xlane.f32.xlu0 %v226
    %v273 = vpop.xlane.xlu0 %272
    %274 = vadd.xlane.f32.xlu0 %v227
    %v275 = vpop.xlane.xlu0 %274
    %276 = vadd.xlane.f32.xlu0 %v228
    %v277 = vpop.xlane.xlu0 %276
    %278 = vadd.xlane.f32.xlu0 %v229
    %v279 = vpop.xlane.xlu0 %278
    %280 = vadd.xlane.f32.xlu0 %v230
    %v281 = vpop.xlane.xlu0 %280
    %282 = vadd.xlane.f32.xlu0 %v231
    %v283 = vpop.xlane.xlu0 %282
    %284 = vadd.xlane.f32.xlu0 %v232
    %v285 = vpop.xlane.xlu0 %284
    %286 = vadd.xlane.f32.xlu0 %v233
    %v287 = vpop.xlane.xlu0 %286
    %288 = vadd.xlane.f32.xlu0 %v234
    %v289 = vpop.xlane.xlu0 %288
    %290 = vadd.xlane.f32.xlu0 %v235
    %v291 = vpop.xlane.xlu0 %290
    %292 = vadd.xlane.f32.xlu0 %v236
    %v293 = vpop.xlane.xlu0 %292
    %294 = vadd.xlane.f32.xlu0 %v237
    %v295 = vpop.xlane.xlu0 %294
    %296 = vadd.xlane.f32.xlu0 %v238
    %v297 = vpop.xlane.xlu0 %296
    %298 = vadd.xlane.f32.xlu0 %v239
    %v299 = vpop.xlane.xlu0 %298
    %300 = vadd.xlane.f32.xlu0 %v240
    %v301 = vpop.xlane.xlu0 %300
    %302 = vadd.xlane.f32.xlu0 %v241
    %v303 = vpop.xlane.xlu0 %302
    %304 = vadd.xlane.f32.xlu0 %v242
    %v305 = vpop.xlane.xlu0 %304
    %306 = vadd.xlane.f32.xlu0 %v243
    %v307 = vpop.xlane.xlu0 %306
    %v308 = vadd.f32 %v245, %v277
    %v309 = vadd.f32 %v247, %v279
    %v310 = vadd.f32 %v249, %v281
    %v311 = vadd.f32 %v251, %v283
    %v312 = vadd.f32 %v253, %v285
    %v313 = vadd.f32 %v255, %v287
    %v314 = vadd.f32 %v257, %v289
    %v315 = vadd.f32 %v259, %v291
    %v316 = vadd.f32 %v261, %v293
    %v317 = vadd.f32 %v263, %v295
    %v318 = vadd.f32 %v265, %v297
    %v319 = vadd.f32 %v267, %v299
    %v320 = vadd.f32 %v269, %v301
    %v321 = vadd.f32 %v271, %v303
    %v322 = vadd.f32 %v273, %v305
    %v323 = vadd.f32 %v275, %v307
    %v324 = vmul.f32 %v308, 0.00390625
    %v325 = vmul.f32 %v309, 0.00390625
    %v326 = vmul.f32 %v310, 0.00390625
    %v327 = vmul.f32 %v311, 0.00390625
    %v328 = vmul.f32 %v312, 0.00390625
    %v329 = vmul.f32 %v313, 0.00390625
    %v330 = vmul.f32 %v314, 0.00390625
    %v331 = vmul.f32 %v315, 0.00390625
    %v332 = vmul.f32 %v316, 0.00390625
    %v333 = vmul.f32 %v317, 0.00390625
    %v334 = vmul.f32 %v318, 0.00390625
    %v335 = vmul.f32 %v319, 0.00390625
    %v336 = vmul.f32 %v320, 0.00390625
    %v337 = vmul.f32 %v321, 0.00390625
    %v338 = vmul.f32 %v322, 0.00390625
    %v339 = vmul.f32 %v323, 0.00390625
    %v340 = vsub.f32 %v212, %v324
    %v341 = vsub.f32 %v213, %v325
    %v342 = vsub.f32 %v214, %v326
    %v343 = vsub.f32 %v215, %v327
    %v344 = vsub.f32 %v216, %v328
    %v345 = vsub.f32 %v217, %v329
    %v346 = vsub.f32 %v218, %v330
    %v347 = vsub.f32 %v219, %v331
    %v348 = vsub.f32 %v220, %v332
    %v349 = vsub.f32 %v221, %v333
    %v350 = vsub.f32 %v222, %v334
    %v351 = vsub.f32 %v223, %v335
    %v352 = vsub.f32 %v224, %v336
    %v353 = vsub.f32 %v225, %v337
    %v354 = vsub.f32 %v226, %v338
    %v355 = vsub.f32 %v227, %v339
    %v356 = vsub.f32 %v228, %v324
    %v357 = vsub.f32 %v229, %v325
    %v358 = vsub.f32 %v230, %v326
    %v359 = vsub.f32 %v231, %v327
    %v360 = vsub.f32 %v232, %v328
    %v361 = vsub.f32 %v233, %v329
    %v362 = vsub.f32 %v234, %v330
    %v363 = vsub.f32 %v235, %v331
    %v364 = vsub.f32 %v236, %v332
    %v365 = vsub.f32 %v237, %v333
    %v366 = vsub.f32 %v238, %v334
    %v367 = vsub.f32 %v239, %v335
    %v368 = vsub.f32 %v240, %v336
    %v369 = vsub.f32 %v241, %v337
    %v370 = vsub.f32 %v242, %v338
    %v371 = vsub.f32 %v243, %v339
    %v372 = vmul.f32 %v340, %v340
    %v373 = vmul.f32 %v341, %v341
    %v374 = vmul.f32 %v342, %v342
    %v375 = vmul.f32 %v343, %v343
    %v376 = vmul.f32 %v344, %v344
    %v377 = vmul.f32 %v345, %v345
    %v378 = vmul.f32 %v346, %v346
    %v379 = vmul.f32 %v347, %v347
    %v380 = vmul.f32 %v348, %v348
    %v381 = vmul.f32 %v349, %v349
    %v382 = vmul.f32 %v350, %v350
    %v383 = vmul.f32 %v351, %v351
    %v384 = vmul.f32 %v352, %v352
    %v385 = vmul.f32 %v353, %v353
    %v386 = vmul.f32 %v354, %v354
    %v387 = vmul.f32 %v355, %v355
    %388 = vadd.xlane.f32.xlu0 %v372
    %v389 = vpop.xlane.xlu0 %388
    %390 = vadd.xlane.f32.xlu0 %v373
    %v391 = vpop.xlane.xlu0 %390
    %392 = vadd.xlane.f32.xlu0 %v374
    %v393 = vpop.xlane.xlu0 %392
    %394 = vadd.xlane.f32.xlu0 %v375
    %v395 = vpop.xlane.xlu0 %394
    %396 = vadd.xlane.f32.xlu0 %v376
    %v397 = vpop.xlane.xlu0 %396
    %398 = vadd.xlane.f32.xlu0 %v377
    %v399 = vpop.xlane.xlu0 %398
    %400 = vadd.xlane.f32.xlu0 %v378
    %v401 = vpop.xlane.xlu0 %400
    %402 = vadd.xlane.f32.xlu0 %v379
    %v403 = vpop.xlane.xlu0 %402
    %404 = vadd.xlane.f32.xlu0 %v380
    %v405 = vpop.xlane.xlu0 %404
    %406 = vadd.xlane.f32.xlu0 %v381
    %v407 = vpop.xlane.xlu0 %406
    %408 = vadd.xlane.f32.xlu0 %v382
    %v409 = vpop.xlane.xlu0 %408
    %410 = vadd.xlane.f32.xlu0 %v383
    %v411 = vpop.xlane.xlu0 %410
    %412 = vadd.xlane.f32.xlu0 %v384
    %v413 = vpop.xlane.xlu0 %412
    %414 = vadd.xlane.f32.xlu0 %v385
    %v415 = vpop.xlane.xlu0 %414
    %416 = vadd.xlane.f32.xlu0 %v386
    %v417 = vpop.xlane.xlu0 %416
    %418 = vadd.xlane.f32.xlu0 %v387
    %v419 = vpop.xlane.xlu0 %418
    %v420 = vmul.f32 %v356, %v356
    %v421 = vmul.f32 %v357, %v357
    %v422 = vmul.f32 %v358, %v358
    %v423 = vmul.f32 %v359, %v359
    %v424 = vmul.f32 %v360, %v360
    %v425 = vmul.f32 %v361, %v361
    %v426 = vmul.f32 %v362, %v362
    %v427 = vmul.f32 %v363, %v363
    %v428 = vmul.f32 %v364, %v364
    %v429 = vmul.f32 %v365, %v365
    %v430 = vmul.f32 %v366, %v366
    %v431 = vmul.f32 %v367, %v367
    %v432 = vmul.f32 %v368, %v368
    %v433 = vmul.f32 %v369, %v369
    %v434 = vmul.f32 %v370, %v370
    %v435 = vmul.f32 %v371, %v371
    %436 = vadd.xlane.f32.xlu0 %v420
    %v437 = vpop.xlane.xlu0 %436
    %438 = vadd.xlane.f32.xlu0 %v421
    %v439 = vpop.xlane.xlu0 %438
    %440 = vadd.xlane.f32.xlu0 %v422
    %v441 = vpop.xlane.xlu0 %440
    %442 = vadd.xlane.f32.xlu0 %v423
    %v443 = vpop.xlane.xlu0 %442
    %444 = vadd.xlane.f32.xlu0 %v424
    %v445 = vpop.xlane.xlu0 %444
    %446 = vadd.xlane.f32.xlu0 %v425
    %v447 = vpop.xlane.xlu0 %446
    %448 = vadd.xlane.f32.xlu0 %v426
    %v449 = vpop.xlane.xlu0 %448
    %450 = vadd.xlane.f32.xlu0 %v427
    %v451 = vpop.xlane.xlu0 %450
    %452 = vadd.xlane.f32.xlu0 %v428
    %v453 = vpop.xlane.xlu0 %452
    %454 = vadd.xlane.f32.xlu0 %v429
    %v455 = vpop.xlane.xlu0 %454
    %456 = vadd.xlane.f32.xlu0 %v430
    %v457 = vpop.xlane.xlu0 %456
    %458 = vadd.xlane.f32.xlu0 %v431
    %v459 = vpop.xlane.xlu0 %458
    %460 = vadd.xlane.f32.xlu0 %v432
    %v461 = vpop.xlane.xlu0 %460
    %462 = vadd.xlane.f32.xlu0 %v433
    %v463 = vpop.xlane.xlu0 %462
    %464 = vadd.xlane.f32.xlu0 %v434
    %v465 = vpop.xlane.xlu0 %464
    %466 = vadd.xlane.f32.xlu0 %v435
    %v467 = vpop.xlane.xlu0 %466
    %v468 = vadd.f32 %v389, %v437
    %v469 = vadd.f32 %v391, %v439
    %v470 = vadd.f32 %v393, %v441
    %v471 = vadd.f32 %v395, %v443
    %v472 = vadd.f32 %v397, %v445
    %v473 = vadd.f32 %v399, %v447
    %v474 = vadd.f32 %v401, %v449
    %v475 = vadd.f32 %v403, %v451
    %v476 = vadd.f32 %v405, %v453
    %v477 = vadd.f32 %v407, %v455
    %v478 = vadd.f32 %v409, %v457
    %v479 = vadd.f32 %v411, %v459
    %v480 = vadd.f32 %v413, %v461
    %v481 = vadd.f32 %v415, %v463
    %v482 = vadd.f32 %v417, %v465
    %v483 = vadd.f32 %v419, %v467
    %v484 = vmul.f32 %v468, 0.00390625
    %v485 = vmul.f32 %v469, 0.00390625
    %v486 = vmul.f32 %v470, 0.00390625
    %v487 = vmul.f32 %v471, 0.00390625
    %v488 = vmul.f32 %v472, 0.00390625
    %v489 = vmul.f32 %v473, 0.00390625
    %v490 = vmul.f32 %v474, 0.00390625
    %v491 = vmul.f32 %v475, 0.00390625
    %v492 = vmul.f32 %v476, 0.00390625
    %v493 = vmul.f32 %v477, 0.00390625
    %v494 = vmul.f32 %v478, 0.00390625
    %v495 = vmul.f32 %v479, 0.00390625
    %v496 = vmul.f32 %v480, 0.00390625
    %v497 = vmul.f32 %v481, 0.00390625
    %v498 = vmul.f32 %v482, 0.00390625
    %v499 = vmul.f32 %v483, 0.00390625
    %v500 = vadd.f32 %v484, 1e-05
    %v501 = vadd.f32 %v485, 1e-05
    %v502 = vadd.f32 %v486, 1e-05
    %v503 = vadd.f32 %v487, 1e-05
    %v504 = vadd.f32 %v488, 1e-05
    %v505 = vadd.f32 %v489, 1e-05
    %v506 = vadd.f32 %v490, 1e-05
    %v507 = vadd.f32 %v491, 1e-05
    %v508 = vadd.f32 %v492, 1e-05
    %v509 = vadd.f32 %v493, 1e-05
    %v510 = vadd.f32 %v494, 1e-05
    %v511 = vadd.f32 %v495, 1e-05
    %v512 = vadd.f32 %v496, 1e-05
    %v513 = vadd.f32 %v497, 1e-05
    %v514 = vadd.f32 %v498, 1e-05
    %v515 = vadd.f32 %v499, 1e-05
    %v516 = vrsqrt.pop %v500
    %v517 = vrsqrt.pop %v501
    %v518 = vrsqrt.pop %v502
    %v519 = vrsqrt.pop %v503
    %v520 = vrsqrt.pop %v504
    %v521 = vrsqrt.pop %v505
    %v522 = vrsqrt.pop %v506
    %v523 = vrsqrt.pop %v507
    %v524 = vrsqrt.pop %v508
    %v525 = vrsqrt.pop %v509
    %v526 = vrsqrt.pop %v510
    %v527 = vrsqrt.pop %v511
    %v528 = vrsqrt.pop %v512
    %v529 = vrsqrt.pop %v513
    %v530 = vrsqrt.pop %v514
    %v531 = vrsqrt.pop %v515
    %v532 = vmul.f32 %v340, %v516
    %v533 = vmul.f32 %v341, %v517
    %v534 = vmul.f32 %v342, %v518
    %v535 = vmul.f32 %v343, %v519
    %v536 = vmul.f32 %v344, %v520
    %v537 = vmul.f32 %v345, %v521
    %v538 = vmul.f32 %v346, %v522
    %v539 = vmul.f32 %v347, %v523
    %v540 = vmul.f32 %v348, %v524
    %v541 = vmul.f32 %v349, %v525
    %v542 = vmul.f32 %v350, %v526
    %v543 = vmul.f32 %v351, %v527
    %v544 = vmul.f32 %v352, %v528
    %v545 = vmul.f32 %v353, %v529
    %v546 = vmul.f32 %v354, %v530
    %v547 = vmul.f32 %v355, %v531
    %v548 = vmul.f32 %v356, %v516
    %v549 = vmul.f32 %v357, %v517
    %v550 = vmul.f32 %v358, %v518
    %v551 = vmul.f32 %v359, %v519
    %v552 = vmul.f32 %v360, %v520
    %v553 = vmul.f32 %v361, %v521
    %v554 = vmul.f32 %v362, %v522
    %v555 = vmul.f32 %v363, %v523
    %v556 = vmul.f32 %v364, %v524
    %v557 = vmul.f32 %v365, %v525
    %v558 = vmul.f32 %v366, %v526
    %v559 = vmul.f32 %v367, %v527
    %v560 = vmul.f32 %v368, %v528
    %v561 = vmul.f32 %v369, %v529
    %v562 = vmul.f32 %v370, %v530
    %v563 = vmul.f32 %v371, %v531
    %v564 = vld [vmem:[%s2] sm:$0xff]
    %v565 = vld [vmem:[%s2 + $0x8] sm:$0xff]
    %v566 = vld [vmem:[%s2 + $0x10] sm:$0xff]
    %v567 = vld [vmem:[%s2 + $0x18] sm:$0xff]
    %v568 = vld [vmem:[%s2 + $0x20] sm:$0xff]
    %v569 = vld [vmem:[%s2 + $0x28] sm:$0xff]
    %v570 = vld [vmem:[%s2 + $0x30] sm:$0xff]
    %v571 = vld [vmem:[%s2 + $0x38] sm:$0xff]
    %v572 = vld [vmem:[%s2 + $0x40] sm:$0xff]
    %v573 = vld [vmem:[%s2 + $0x48] sm:$0xff]
    %v574 = vld [vmem:[%s2 + $0x50] sm:$0xff]
    %v575 = vld [vmem:[%s2 + $0x58] sm:$0xff]
    %v576 = vld [vmem:[%s2 + $0x60] sm:$0xff]
    %v577 = vld [vmem:[%s2 + $0x68] sm:$0xff]
    %v578 = vld [vmem:[%s2 + $0x70] sm:$0xff]
    %v579 = vld [vmem:[%s2 + $0x78] sm:$0xff]
    %v580 = vld [vmem:[%s3] sm:$0xff]
    %v581 = vld [vmem:[%s3 + $0x8] sm:$0xff]
    %v582 = vld [vmem:[%s3 + $0x10] sm:$0xff]
    %v583 = vld [vmem:[%s3 + $0x18] sm:$0xff]
    %v584 = vld [vmem:[%s3 + $0x20] sm:$0xff]
    %v585 = vld [vmem:[%s3 + $0x28] sm:$0xff]
    %v586 = vld [vmem:[%s3 + $0x30] sm:$0xff]
    %v587 = vld [vmem:[%s3 + $0x38] sm:$0xff]
    %v588 = vld [vmem:[%s3 + $0x40] sm:$0xff]
    %v589 = vld [vmem:[%s3 + $0x48] sm:$0xff]
    %v590 = vld [vmem:[%s3 + $0x50] sm:$0xff]
    %v591 = vld [vmem:[%s3 + $0x58] sm:$0xff]
    %v592 = vld [vmem:[%s3 + $0x60] sm:$0xff]
    %v593 = vld [vmem:[%s3 + $0x68] sm:$0xff]
    %v594 = vld [vmem:[%s3 + $0x70] sm:$0xff]
    %v595 = vld [vmem:[%s3 + $0x78] sm:$0xff]
    %596 = vmatprep.subr.mxu0 0.0
    %597 = vmatpush1.msra.mxu0 %v595
    %598 = vmatprep.subr.mxu0 0.0
    %599 = vmatpush1.msra.mxu0 %v594
    %600 = vmatprep.subr.mxu0 0.0
    %601 = vmatpush1.msra.mxu0 %v593
    %602 = vmatprep.subr.mxu0 0.0
    %603 = vmatpush1.msra.mxu0 %v592
    %604 = vmatprep.subr.mxu0 0.0
    %605 = vmatpush1.msra.mxu0 %v591
    %606 = vmatprep.subr.mxu0 0.0
    %607 = vmatpush1.msra.mxu0 %v590
    %608 = vmatprep.subr.mxu0 0.0
    %609 = vmatpush1.msra.mxu0 %v589
    %610 = vmatprep.subr.mxu0 0.0
    %611 = vmatpush1.msra.mxu0 %v588
    %612 = vmatprep.subr.mxu0 0.0
    %613 = vmatpush1.msra.mxu0 %v587
    %614 = vmatprep.subr.mxu0 0.0
    %615 = vmatpush1.msra.mxu0 %v586
    %616 = vmatprep.subr.mxu0 0.0
    %617 = vmatpush1.msra.mxu0 %v585
    %618 = vmatprep.subr.mxu0 0.0
    %619 = vmatpush1.msra.mxu0 %v584
    %620 = vmatprep.subr.mxu0 0.0
    %621 = vmatpush1.msra.mxu0 %v583
    %622 = vmatprep.subr.mxu0 0.0
    %623 = vmatpush1.msra.mxu0 %v582
    %624 = vmatprep.subr.mxu0 0.0
    %625 = vmatpush1.msra.mxu0 %v581
    %626 = vmatprep.subr.mxu0 0.0
    %627 = vmatpush1.msra.mxu0 %v580
    %628 = vmatprep.subr.mxu0 0.0
    %629 = vmatpush2.msra.mxu0 0.0
    %630 = vmatprep.subr.mxu0 0.0
    %631 = vmatpush2.msra.mxu0 0.0
    %632 = vmatprep.subr.mxu0 0.0
    %633 = vmatpush2.msra.mxu0 0.0
    %634 = vmatprep.subr.mxu0 0.0
    %635 = vmatpush2.msra.mxu0 0.0
    %636 = vmatprep.subr.mxu0 0.0
    %637 = vmatpush2.msra.mxu0 0.0
    %638 = vmatprep.subr.mxu0 0.0
    %639 = vmatpush2.msra.mxu0 0.0
    %640 = vmatprep.subr.mxu0 0.0
    %641 = vmatpush2.msra.mxu0 0.0
    %642 = vmatprep.subr.mxu0 0.0
    %643 = vmatpush2.msra.mxu0 0.0
    %644 = vmatprep.subr.mxu0 0.0
    %645 = vmatpush2.msra.mxu0 0.0
    %646 = vmatprep.subr.mxu0 0.0
    %647 = vmatpush2.msra.mxu0 0.0
    %648 = vmatprep.subr.mxu0 0.0
    %649 = vmatpush2.msra.mxu0 0.0
    %650 = vmatprep.subr.mxu0 0.0
    %651 = vmatpush2.msra.mxu0 0.0
    %652 = vmatprep.subr.mxu0 0.0
    %653 = vmatpush2.msra.mxu0 0.0
    %654 = vmatprep.subr.mxu0 0.0
    %655 = vmatpush2.msra.mxu0 0.0
    %656 = vmatprep.subr.mxu0 0.0
    %657 = vmatpush2.msra.mxu0 0.0
    %658 = vmatprep.subr.mxu0 0.0
    %659 = vmatpush2.msra.mxu0 0.0
    %660 = vmatprep.mubr.f32.mxu0 0.0
    %661 = vmatmul.mubr.f32.gmra.mxu0 %v548
    %v662 = vpop.f32.mrf.mxu0
    %v663 = vadd.f32 0.0, %v662
    %v664 = vpop.f32.mrf.mxu0
    %665 = vmatprep.mubr.f32.mxu0 0.0
    %666 = vmatmul.mubr.f32.gmra.mxu0 %v549
    %v667 = vpop.f32.mrf.mxu0
    %v668 = vadd.f32 0.0, %v667
    %v669 = vpop.f32.mrf.mxu0
    %670 = vmatprep.mubr.f32.mxu0 0.0
    %671 = vmatmul.mubr.f32.gmra.mxu0 %v550
    %v672 = vpop.f32.mrf.mxu0
    %v673 = vadd.f32 0.0, %v672
    %v674 = vpop.f32.mrf.mxu0
    %675 = vmatprep.mubr.f32.mxu0 0.0
    %676 = vmatmul.mubr.f32.gmra.mxu0 %v551
    %v677 = vpop.f32.mrf.mxu0
    %v678 = vadd.f32 0.0, %v677
    %v679 = vpop.f32.mrf.mxu0
    %680 = vmatprep.mubr.f32.mxu0 0.0
    %681 = vmatmul.mubr.f32.gmra.mxu0 %v552
    %v682 = vpop.f32.mrf.mxu0
    %v683 = vadd.f32 0.0, %v682
    %v684 = vpop.f32.mrf.mxu0
    %685 = vmatprep.mubr.f32.mxu0 0.0
    %686 = vmatmul.mubr.f32.gmra.mxu0 %v553
    %v687 = vpop.f32.mrf.mxu0
    %v688 = vadd.f32 0.0, %v687
    %v689 = vpop.f32.mrf.mxu0
    %690 = vmatprep.mubr.f32.mxu0 0.0
    %691 = vmatmul.mubr.f32.gmra.mxu0 %v554
    %v692 = vpop.f32.mrf.mxu0
    %v693 = vadd.f32 0.0, %v692
    %v694 = vpop.f32.mrf.mxu0
    %695 = vmatprep.mubr.f32.mxu0 0.0
    %696 = vmatmul.mubr.f32.gmra.mxu0 %v555
    %v697 = vpop.f32.mrf.mxu0
    %v698 = vadd.f32 0.0, %v697
    %v699 = vpop.f32.mrf.mxu0
    %700 = vmatprep.mubr.f32.mxu0 0.0
    %701 = vmatmul.mubr.f32.gmra.mxu0 %v556
    %v702 = vpop.f32.mrf.mxu0
    %v703 = vadd.f32 0.0, %v702
    %v704 = vpop.f32.mrf.mxu0
    %705 = vmatprep.mubr.f32.mxu0 0.0
    %706 = vmatmul.mubr.f32.gmra.mxu0 %v557
    %v707 = vpop.f32.mrf.mxu0
    %v708 = vadd.f32 0.0, %v707
    %v709 = vpop.f32.mrf.mxu0
    %710 = vmatprep.mubr.f32.mxu0 0.0
    %711 = vmatmul.mubr.f32.gmra.mxu0 %v558
    %v712 = vpop.f32.mrf.mxu0
    %v713 = vadd.f32 0.0, %v712
    %v714 = vpop.f32.mrf.mxu0
    %715 = vmatprep.mubr.f32.mxu0 0.0
    %716 = vmatmul.mubr.f32.gmra.mxu0 %v559
    %v717 = vpop.f32.mrf.mxu0
    %v718 = vadd.f32 0.0, %v717
    %v719 = vpop.f32.mrf.mxu0
    %720 = vmatprep.mubr.f32.mxu0 0.0
    %721 = vmatmul.mubr.f32.gmra.mxu0 %v560
    %v722 = vpop.f32.mrf.mxu0
    %v723 = vadd.f32 0.0, %v722
    %v724 = vpop.f32.mrf.mxu0
    %725 = vmatprep.mubr.f32.mxu0 0.0
    %726 = vmatmul.mubr.f32.gmra.mxu0 %v561
    %v727 = vpop.f32.mrf.mxu0
    %v728 = vadd.f32 0.0, %v727
    %v729 = vpop.f32.mrf.mxu0
    %730 = vmatprep.mubr.f32.mxu0 0.0
    %731 = vmatmul.mubr.f32.gmra.mxu0 %v562
    %v732 = vpop.f32.mrf.mxu0
    %v733 = vadd.f32 0.0, %v732
    %v734 = vpop.f32.mrf.mxu0
    %735 = vmatprep.mubr.f32.mxu0 0.0
    %736 = vmatmul.mubr.f32.gmra.mxu0 %v563
    %v737 = vpop.f32.mrf.mxu0
    %v738 = vadd.f32 0.0, %v737
    %v739 = vpop.f32.mrf.mxu0
    %740 = vdwg.mxu0
    %741 = vmatprep.subr.mxu0 0.0
    %742 = vmatpush1.msra.mxu0 %v579
    %743 = vmatprep.subr.mxu0 0.0
    %744 = vmatpush1.msra.mxu0 %v578
    %745 = vmatprep.subr.mxu0 0.0
    %746 = vmatpush1.msra.mxu0 %v577
    %747 = vmatprep.subr.mxu0 0.0
    %748 = vmatpush1.msra.mxu0 %v576
    %749 = vmatprep.subr.mxu0 0.0
    %750 = vmatpush1.msra.mxu0 %v575
    %751 = vmatprep.subr.mxu0 0.0
    %752 = vmatpush1.msra.mxu0 %v574
    %753 = vmatprep.subr.mxu0 0.0
    %754 = vmatpush1.msra.mxu0 %v573
    %755 = vmatprep.subr.mxu0 0.0
    %756 = vmatpush1.msra.mxu0 %v572
    %757 = vmatprep.subr.mxu0 0.0
    %758 = vmatpush1.msra.mxu0 %v571
    %759 = vmatprep.subr.mxu0 0.0
    %760 = vmatpush1.msra.mxu0 %v570
    %761 = vmatprep.subr.mxu0 0.0
    %762 = vmatpush1.msra.mxu0 %v569
    %763 = vmatprep.subr.mxu0 0.0
    %764 = vmatpush1.msra.mxu0 %v568
    %765 = vmatprep.subr.mxu0 0.0
    %766 = vmatpush1.msra.mxu0 %v567
    %767 = vmatprep.subr.mxu0 0.0
    %768 = vmatpush1.msra.mxu0 %v566
    %769 = vmatprep.subr.mxu0 0.0
    %770 = vmatpush1.msra.mxu0 %v565
    %771 = vmatprep.subr.mxu0 0.0
    %772 = vmatpush1.msra.mxu0 %v564
    %773 = vmatprep.subr.mxu0 0.0
    %774 = vmatpush2.msra.mxu0 0.0
    %775 = vmatprep.subr.mxu0 0.0
    %776 = vmatpush2.msra.mxu0 0.0
    %777 = vmatprep.subr.mxu0 0.0
    %778 = vmatpush2.msra.mxu0 0.0
    %779 = vmatprep.subr.mxu0 0.0
    %780 = vmatpush2.msra.mxu0 0.0
    %781 = vmatprep.subr.mxu0 0.0
    %782 = vmatpush2.msra.mxu0 0.0
    %783 = vmatprep.subr.mxu0 0.0
    %784 = vmatpush2.msra.mxu0 0.0
    %785 = vmatprep.subr.mxu0 0.0
    %786 = vmatpush2.msra.mxu0 0.0
    %787 = vmatprep.subr.mxu0 0.0
    %788 = vmatpush2.msra.mxu0 0.0
    %789 = vmatprep.subr.mxu0 0.0
    %790 = vmatpush2.msra.mxu0 0.0
    %791 = vmatprep.subr.mxu0 0.0
    %792 = vmatpush2.msra.mxu0 0.0
    %793 = vmatprep.subr.mxu0 0.0
    %794 = vmatpush2.msra.mxu0 0.0
    %795 = vmatprep.subr.mxu0 0.0
    %796 = vmatpush2.msra.mxu0 0.0
    %797 = vmatprep.subr.mxu0 0.0
    %798 = vmatpush2.msra.mxu0 0.0
    %799 = vmatprep.subr.mxu0 0.0
    %800 = vmatpush2.msra.mxu0 0.0
    %801 = vmatprep.subr.mxu0 0.0
    %802 = vmatpush2.msra.mxu0 0.0
    %803 = vmatprep.subr.mxu0 0.0
    %804 = vmatpush2.msra.mxu0 0.0
    %805 = vmatprep.mubr.f32.mxu0 0.0
    %806 = vmatmul.mubr.f32.gmra.mxu0 %v532
    %v807 = vpop.f32.mrf.mxu0
    %v808 = vadd.f32 %v663, %v807
    %v809 = vpop.f32.mrf.mxu0
    %810 = vmatprep.mubr.f32.mxu0 0.0
    %811 = vmatmul.mubr.f32.gmra.mxu0 %v533
    %v812 = vpop.f32.mrf.mxu0
    %v813 = vadd.f32 %v668, %v812
    %v814 = vpop.f32.mrf.mxu0
    %815 = vmatprep.mubr.f32.mxu0 0.0
    %816 = vmatmul.mubr.f32.gmra.mxu0 %v534
    %v817 = vpop.f32.mrf.mxu0
    %v818 = vadd.f32 %v673, %v817
    %v819 = vpop.f32.mrf.mxu0
    %820 = vmatprep.mubr.f32.mxu0 0.0
    %821 = vmatmul.mubr.f32.gmra.mxu0 %v535
    %v822 = vpop.f32.mrf.mxu0
    %v823 = vadd.f32 %v678, %v822
    %v824 = vpop.f32.mrf.mxu0
    %825 = vmatprep.mubr.f32.mxu0 0.0
    %826 = vmatmul.mubr.f32.gmra.mxu0 %v536
    %v827 = vpop.f32.mrf.mxu0
    %v828 = vadd.f32 %v683, %v827
    %v829 = vpop.f32.mrf.mxu0
    %830 = vmatprep.mubr.f32.mxu0 0.0
    %831 = vmatmul.mubr.f32.gmra.mxu0 %v537
    %v832 = vpop.f32.mrf.mxu0
    %v833 = vadd.f32 %v688, %v832
    %v834 = vpop.f32.mrf.mxu0
    %835 = vmatprep.mubr.f32.mxu0 0.0
    %836 = vmatmul.mubr.f32.gmra.mxu0 %v538
    %v837 = vpop.f32.mrf.mxu0
    %v838 = vadd.f32 %v693, %v837
    %v839 = vpop.f32.mrf.mxu0
    %840 = vmatprep.mubr.f32.mxu0 0.0
    %841 = vmatmul.mubr.f32.gmra.mxu0 %v539
    %v842 = vpop.f32.mrf.mxu0
    %v843 = vadd.f32 %v698, %v842
    %v844 = vpop.f32.mrf.mxu0
    %845 = vmatprep.mubr.f32.mxu0 0.0
    %846 = vmatmul.mubr.f32.gmra.mxu0 %v540
    %v847 = vpop.f32.mrf.mxu0
    %v848 = vadd.f32 %v703, %v847
    %v849 = vpop.f32.mrf.mxu0
    %850 = vmatprep.mubr.f32.mxu0 0.0
    %851 = vmatmul.mubr.f32.gmra.mxu0 %v541
    %v852 = vpop.f32.mrf.mxu0
    %v853 = vadd.f32 %v708, %v852
    %v854 = vpop.f32.mrf.mxu0
    %855 = vmatprep.mubr.f32.mxu0 0.0
    %856 = vmatmul.mubr.f32.gmra.mxu0 %v542
    %v857 = vpop.f32.mrf.mxu0
    %v858 = vadd.f32 %v713, %v857
    %v859 = vpop.f32.mrf.mxu0
    %860 = vmatprep.mubr.f32.mxu0 0.0
    %861 = vmatmul.mubr.f32.gmra.mxu0 %v543
    %v862 = vpop.f32.mrf.mxu0
    %v863 = vadd.f32 %v718, %v862
    %v864 = vpop.f32.mrf.mxu0
    %865 = vmatprep.mubr.f32.mxu0 0.0
    %866 = vmatmul.mubr.f32.gmra.mxu0 %v544
    %v867 = vpop.f32.mrf.mxu0
    %v868 = vadd.f32 %v723, %v867
    %v869 = vpop.f32.mrf.mxu0
    %870 = vmatprep.mubr.f32.mxu0 0.0
    %871 = vmatmul.mubr.f32.gmra.mxu0 %v545
    %v872 = vpop.f32.mrf.mxu0
    %v873 = vadd.f32 %v728, %v872
    %v874 = vpop.f32.mrf.mxu0
    %875 = vmatprep.mubr.f32.mxu0 0.0
    %876 = vmatmul.mubr.f32.gmra.mxu0 %v546
    %v877 = vpop.f32.mrf.mxu0
    %v878 = vadd.f32 %v733, %v877
    %v879 = vpop.f32.mrf.mxu0
    %880 = vmatprep.mubr.f32.mxu0 0.0
    %881 = vmatmul.mubr.f32.gmra.mxu0 %v547
    %v882 = vpop.f32.mrf.mxu0
    %v883 = vadd.f32 %v738, %v882
    %v884 = vpop.f32.mrf.mxu0
    %885 = vdwg.mxu0
    %v886 = vld [vmem:[%s4] sm:$0x1]
    %v888 = vlaneseq
    %v889 = vshrl.u32 %v888, 7
    %v890 = vsub.s32 0, %v889
    %v891 = vrot.slane %v886, %v890
    %v893 = vadd.f32 %v808, %v891
    %v894 = vadd.f32 %v813, %v891
    %v895 = vadd.f32 %v818, %v891
    %v896 = vadd.f32 %v823, %v891
    %v897 = vadd.f32 %v828, %v891
    %v898 = vadd.f32 %v833, %v891
    %v899 = vadd.f32 %v838, %v891
    %v900 = vadd.f32 %v843, %v891
    %v901 = vadd.f32 %v848, %v891
    %v902 = vadd.f32 %v853, %v891
    %v903 = vadd.f32 %v858, %v891
    %v904 = vadd.f32 %v863, %v891
    %v905 = vadd.f32 %v868, %v891
    %v906 = vadd.f32 %v873, %v891
    %v907 = vadd.f32 %v878, %v891
    %v908 = vadd.f32 %v883, %v891
    %909 = vst [vmem:[#allocation4] sm:$0xff] %v893
    %910 = vst [vmem:[#allocation4 + $0x8] sm:$0xff] %v894
    %911 = vst [vmem:[#allocation4 + $0x10] sm:$0xff] %v895
    %912 = vst [vmem:[#allocation4 + $0x18] sm:$0xff] %v896
    %913 = vst [vmem:[#allocation4 + $0x20] sm:$0xff] %v897
    %914 = vst [vmem:[#allocation4 + $0x28] sm:$0xff] %v898
    %915 = vst [vmem:[#allocation4 + $0x30] sm:$0xff] %v899
    %916 = vst [vmem:[#allocation4 + $0x38] sm:$0xff] %v900
    %917 = vst [vmem:[#allocation4 + $0x40] sm:$0xff] %v901
    %918 = vst [vmem:[#allocation4 + $0x48] sm:$0xff] %v902
    %919 = vst [vmem:[#allocation4 + $0x50] sm:$0xff] %v903
    %920 = vst [vmem:[#allocation4 + $0x58] sm:$0xff] %v904
    %921 = vst [vmem:[#allocation4 + $0x60] sm:$0xff] %v905
    %922 = vst [vmem:[#allocation4 + $0x68] sm:$0xff] %v906
    %923 = vst [vmem:[#allocation4 + $0x70] sm:$0xff] %v907
    %924 = vst [vmem:[#allocation4 + $0x78] sm:$0xff] %v908
    // Predicated region
    $region98: #{patch_merging_pallas.1} parent=1 // pred_check
      _
    $region99: #{patch_merging_pallas.1} parent=1 // pred_check_branch
      %926 = sbr.rel (0) target = $region101
    $region100: #{patch_merging_pallas.1} parent=1 // pred_region
      %s928 = ssub.s32 2048, 2048
      %929 = vsyncadd [#allocation5], %s928
      %s930 = sshll.u32 [#allocation4], 4
      %s931 = int_to_ptr.vmem [resolvable:$true] %s930
      %936 = dma.vmem_to_hbm [thread:$0]  %s931, 2048, %s5, [#allocation5], 128, 128, 8
    $region101: #{patch_merging_pallas.1} parent=1 // pred_fallthru
      _
    // Predicated region
    $region102: #{patch_merging_pallas.1} parent=1 // pred_check
      _
    $region103: #{patch_merging_pallas.1} parent=1 // pred_check_branch
      %938 = sbr.rel (0) target = $region105
    $region104: #{patch_merging_pallas.1} parent=1 // pred_region
      %939 = dma.done [#allocation5], 2048
    $region105: #{patch_merging_pallas.1} parent=1 // pred_fallthru
      _
    %940 = vsyncpa [#allocation5], 1

</llo_original>
